<compile_context>
chip_gen: v7x
topology: tpu7x:2x2x1
jax: 0.10.0
libtpu: 0.0.40
codegen_flags: <defaults>
</compile_context>

<pallas_src>
import functools

import jax
import jax.numpy as jnp
from jax.experimental import pallas as pl
from jax.experimental.pallas import tpu as pltpu


# ---------------------------------------------------------------------------
# Kernels
# ---------------------------------------------------------------------------

def _fused_kernel(x_ref, w1_ref, w2_ref, o_ref):
    """Whole-image block: pool + MLP + sigmoid + gate in one pass."""
    # x_ref: (1, C, HW)   w1_ref: (Ch, C)   w2_ref: (C, Ch)   o_ref: (1, C, HW)
    xf = x_ref[0].astype(jnp.float32)                        # f32 math (bf16 guard)
    hw = xf.shape[-1]

    avg = jnp.sum(xf, axis=-1, keepdims=True) * (1.0 / hw)   # (C, 1)  lane reduce
    mx = jnp.max(xf, axis=-1, keepdims=True)                 # (C, 1)  lane reduce

    w1 = w1_ref[...].astype(jnp.float32)                     # (Ch, C)
    w2 = w2_ref[...].astype(jnp.float32)                     # (C, Ch)

    # fc2 is linear & bias-free:
    #   fc2(relu(fc1(avg))) + fc2(relu(fc1(max))) == fc2(relu(fc1(avg)) + relu(fc1(max)))
    # -> share the second matmul (fewer MXU pushes for these M/N=1 dots).
    h = (jnp.maximum(jnp.dot(w1, avg, preferred_element_type=jnp.float32), 0.0)
         + jnp.maximum(jnp.dot(w1, mx, preferred_element_type=jnp.float32), 0.0))  # (Ch, 1)
    scale = jax.nn.sigmoid(jnp.dot(w2, h, preferred_element_type=jnp.float32))     # (C, 1)

    o_ref[0] = (xf * scale).astype(o_ref.dtype)              # broadcast over HW lanes


def _pool_kernel(x_ref, avg_ref, max_ref, sum_acc, max_acc, *, inv_hw):
    """HW-tiled avg/max pooling with f32 accumulators (init/finalize via pl.when)."""
    t = pl.program_id(1)

    @pl.when(t == 0)
    def _():
        sum_acc[...] = jnp.zeros_like(sum_acc)
        max_acc[...] = jnp.full_like(max_acc, -jnp.inf)

    xf = x_ref[0].astype(jnp.float32)                        # (C, THW)
    sum_acc[...] += jnp.sum(xf, axis=-1, keepdims=True)
    max_acc[...] = jnp.maximum(max_acc[...], jnp.max(xf, axis=-1, keepdims=True))

    @pl.when(t == pl.num_programs(1) - 1)
    def _():
        avg_ref[0] = sum_acc[...] * inv_hw                   # (C, 1), f32
        max_ref[0] = max_acc[...]                            # (C, 1), f32


def _apply_kernel(x_ref, scale_ref, o_ref):
    """Gate application: o = x * scale, scale broadcast over HW lanes."""
    xf = x_ref[0].astype(jnp.float32)                        # (C, THW)
    o_ref[0] = (xf * scale_ref[0]).astype(o_ref.dtype)       # scale_ref[0]: (C, 1) f32


# ---------------------------------------------------------------------------
# Wrapper
# ---------------------------------------------------------------------------

def _pick_hw_tile(hw, c, dsize, budget_bytes):
    """Largest multiple-of-128 divisor of hw whose (C, tile) block fits the budget."""
    cap = (budget_bytes // (c * dsize)) // 128 * 128
    t = min(cap, hw) // 128 * 128
    while t >= 128:
        if hw % t == 0:
            return t
        t -= 128
    # HW not tileable into lane-dense multiple-of-128 tiles -> whole map (full-dim
    # last block is always legal; may be VMEM-heavy only for very large odd maps).
    return hw


def channel_attention_pallas(x_nchw, w1, w2, *,
                             block_budget_bytes=4 * 1024 * 1024,
                             vmem_limit_bytes=64 * 1024 * 1024):
    """CBAM channel attention.  x_nchw: (N, C, H, W); w1: (Ch, C) fc1; w2: (C, Ch) fc2."""
    N, C, H, W = x_nchw.shape
    Ch = w1.shape[0]
    HW = H * W
    dsize = x_nchw.dtype.itemsize

    x = x_nchw.reshape(N, C, HW)   # free reshape; stays NCHW-native (C sublanes, HW lanes)

    if C * HW * dsize <= block_budget_bytes:
        # ---------------- fused single-pass path (read once / write once) ----
        cost = pl.CostEstimate(
            flops=4 * N * C * HW + 6 * N * C * Ch,
            transcendentals=N * C,
            bytes_accessed=2 * N * C * HW * dsize + 2 * C * Ch * w1.dtype.itemsize)
        out = pl.pallas_call(
            _fused_kernel,
            out_shape=jax.ShapeDtypeStruct((N, C, HW), x.dtype),
            grid_spec=pltpu.PrefetchScalarGridSpec(
                num_scalar_prefetch=0,
                grid=(N,),
                in_specs=[
                    pl.BlockSpec((1, C, HW), lambda n: (n, 0, 0)),
                    pl.BlockSpec((Ch, C), lambda n: (0, 0)),
                    pl.BlockSpec((C, Ch), lambda n: (0, 0)),
                ],
                out_specs=pl.BlockSpec((1, C, HW), lambda n: (n, 0, 0))),
            compiler_params=pltpu.CompilerParams(
                dimension_semantics=("parallel",),
                vmem_limit_bytes=vmem_limit_bytes),
            cost_estimate=cost,
        )(x, w1, w2)
        return out.reshape(N, C, H, W)

    # ---------------- tiled two-pass path (large feature maps) ---------------
    thw = _pick_hw_tile(HW, C, dsize, block_budget_bytes)
    num_t = HW // thw

    # Pass 1: per-image avg/max pooled vectors (f32).
    pool_cost = pl.CostEstimate(
        flops=2 * N * C * HW, transcendentals=0,
        bytes_accessed=N * C * HW * dsize + 2 * N * C * 4)
    avg, mx = pl.pallas_call(
        functools.partial(_pool_kernel, inv_hw=1.0 / HW),
        out_shape=(jax.ShapeDtypeStruct((N, C, 1), jnp.float32),
                   jax.ShapeDtypeStruct((N, C, 1), jnp.float32)),
        grid_spec=pltpu.PrefetchScalarGridSpec(
            num_scalar_prefetch=0,
            grid=(N, num_t),
            in_specs=[pl.BlockSpec((1, C, thw), lambda n, t: (n, 0, t))],
            out_specs=[pl.BlockSpec((1, C, 1), lambda n, t: (n, 0, 0)),
                       pl.BlockSpec((1, C, 1), lambda n, t: (n, 0, 0))],
            scratch_shapes=[pltpu.VMEM((C, 1), jnp.float32),
                            pltpu.VMEM((C, 1), jnp.float32)]),
        compiler_params=pltpu.CompilerParams(
            dimension_semantics=("parallel", "arbitrary"),
            vmem_limit_bytes=vmem_limit_bytes),
        cost_estimate=pool_cost,
    )(x)

    # Tiny shared MLP + sigmoid on pooled (N, C) vectors: plain JAX, f32.
    w1f = w1.astype(jnp.float32)
    w2f = w2.astype(jnp.float32)
    h = (jnp.maximum(avg[..., 0] @ w1f.T, 0.0)
         + jnp.maximum(mx[..., 0] @ w1f.T, 0.0))             # (N, Ch)
    scale = jax.nn.sigmoid(h @ w2f.T)[..., None]             # (N, C, 1), f32

    # Pass 2: apply the channel gate, fully parallel over (N, HW tiles).
    apply_cost = pl.CostEstimate(
        flops=N * C * HW, transcendentals=0,
        bytes_accessed=2 * N * C * HW * dsize + N * C * 4)
    out = pl.pallas_call(
        _apply_kernel,
        out_shape=jax.ShapeDtypeStruct((N, C, HW), x.dtype),
        grid_spec=pltpu.PrefetchScalarGridSpec(
            num_scalar_prefetch=0,
            grid=(N, num_t),
            in_specs=[pl.BlockSpec((1, C, thw), lambda n, t: (n, 0, t)),
                      pl.BlockSpec((1, C, 1), lambda n, t: (n, 0, 0))],
            out_specs=pl.BlockSpec((1, C, thw), lambda n, t: (n, 0, t))),
        compiler_params=pltpu.CompilerParams(
            dimension_semantics=("parallel", "parallel"),
            vmem_limit_bytes=vmem_limit_bytes),
        cost_estimate=apply_cost,
    )(x, scale)
    return out.reshape(N, C, H, W)


# ---------------------------------------------------------------------------
# Pure-JAX reference (matches the PyTorch forward)
# ---------------------------------------------------------------------------

def channel_attention_ref(x_nchw, w1, w2):
    avg = jnp.mean(x_nchw, axis=(2, 3))                      # (N, C)
    mx = jnp.max(x_nchw, axis=(2, 3))                        # (N, C)

    def mlp(v):
        return jnp.maximum(v @ w1.T, 0.0) @ w2.T

    scale = jax.nn.sigmoid(mlp(avg) + mlp(mx))               # (N, C)
    return x_nchw * scale[:, :, None, None]


if __name__ == "__main__":
    # in_planes must be >= 16 (the module's fc1 uses in_planes // 16).
    N, C, H, W = 2, 64, 16, 16
    Ch = C // 16

    key = jax.random.PRNGKey(0)
    kx, k1, k2 = jax.random.split(key, 3)
    x = jax.random.normal(kx, (N, C, H, W), dtype=jnp.float32)
    w1 = jax.random.normal(k1, (Ch, C), dtype=jnp.float32) * 0.1   # fc1 1x1-conv weight
    w2 = jax.random.normal(k2, (C, Ch), dtype=jnp.float32) * 0.1   # fc2 1x1-conv weight

    ref = channel_attention_ref(x, w1, w2)

    # Fused single-pass path (whole (C, HW) block fits in VMEM).
    out_fused = jax.block_until_ready(channel_attention_pallas(x, w1, w2))
    assert out_fused.shape == (N, C, H, W)
    assert jnp.allclose(out_fused, ref, atol=1e-5, rtol=1e-5), "fused path mismatch"

    # HW-tiled two-pass path: force tiling with a small per-block budget
    # (C*HW*4B = 64 KiB > 48 KiB -> 128-lane tiles, 2 HW tiles per image).
    out_tiled = jax.block_until_ready(
        channel_attention_pallas(x, w1, w2, block_budget_bytes=48 * 1024))
    assert jnp.allclose(out_tiled, ref, atol=1e-5, rtol=1e-5), "tiled path mismatch"

    print("KERNEL_OK")
</pallas_src>

<mosaic_0001>
module attributes {stable_mosaic.version = 11 : i64} {
  func.func @_fused_kernel(%arg0: i32, %arg1: memref<1x64x256xf32, #tpu.memory_space<vmem>>, %arg2: memref<4x64xf32, #tpu.memory_space<vmem>>, %arg3: memref<64x4xf32, #tpu.memory_space<vmem>>, %arg4: memref<1x64x256xf32, #tpu.memory_space<vmem>>) attributes {dimension_semantics = [#tpu.dimension_semantics<parallel>], iteration_bounds = array<i64: 2>, scalar_prefetch = 0 : i64, scratch_operands = 0 : i64, tpu.core_type = #tpu.core_type<tc>, window_params = [{transform_indices = @transform_0, window_bounds = array<i64: 1, 64, 256>}, {pipeline_mode = #tpu.pipeline_mode<synchronous>, transform_indices = @transform_1, window_bounds = array<i64: 4, 64>}, {pipeline_mode = #tpu.pipeline_mode<synchronous>, transform_indices = @transform_2, window_bounds = array<i64: 64, 4>}, {transform_indices = @transform_3, window_bounds = array<i64: 1, 64, 256>}]} {
    %c0 = arith.constant 0 : index
    %c0_0 = arith.constant 0 : index
    %c0_1 = arith.constant 0 : index
    %0 = vector.load %arg1[%c0, %c0_0, %c0_1] : memref<1x64x256xf32, #tpu.memory_space<vmem>>, vector<1x64x256xf32>
    %1 = vector.shape_cast %0 : vector<1x64x256xf32> to vector<64x256xf32>
    %cst = arith.constant dense<0.000000e+00> : vector<64xf32>
    %2 = vector.multi_reduction <add>, %1, %cst [1] : vector<64x256xf32> to vector<64xf32>
    %3 = vector.shape_cast %2 : vector<64xf32> to vector<64x1xf32>
    %cst_2 = arith.constant 3.906250e-03 : f32
    %4 = vector.broadcast %cst_2 : f32 to vector<64x1xf32>
    %5 = arith.mulf %3, %4 : vector<64x1xf32>
    %cst_3 = arith.constant dense<0xFF800000> : vector<64xf32>
    %6 = vector.multi_reduction <maximumf>, %1, %cst_3 [1] : vector<64x256xf32> to vector<64xf32>
    %7 = vector.shape_cast %6 : vector<64xf32> to vector<64x1xf32>
    %c0_4 = arith.constant 0 : index
    %c0_5 = arith.constant 0 : index
    %8 = vector.load %arg2[%c0_4, %c0_5] : memref<4x64xf32, #tpu.memory_space<vmem>>, vector<4x64xf32>
    %c0_6 = arith.constant 0 : index
    %c0_7 = arith.constant 0 : index
    %9 = vector.load %arg3[%c0_6, %c0_7] : memref<64x4xf32, #tpu.memory_space<vmem>>, vector<64x4xf32>
    %cst_8 = arith.constant dense<0.000000e+00> : vector<4x1xf32>
    %10 = tpu.matmul %8, %5, %cst_8 {dimension_numbers = #tpu.dot_dimension_numbers<[1], [0], [0], [1], [0, 0, 1, 1], [], []>} : vector<4x64xf32>, vector<64x1xf32>, vector<4x1xf32> -> vector<4x1xf32>
    %cst_9 = arith.constant 0.000000e+00 : f32
    %11 = vector.broadcast %cst_9 : f32 to vector<4x1xf32>
    %12 = arith.maximumf %10, %11 : vector<4x1xf32>
    %cst_10 = arith.constant dense<0.000000e+00> : vector<4x1xf32>
    %13 = tpu.matmul %8, %7, %cst_10 {dimension_numbers = #tpu.dot_dimension_numbers<[1], [0], [0], [1], [0, 0, 1, 1], [], []>} : vector<4x64xf32>, vector<64x1xf32>, vector<4x1xf32> -> vector<4x1xf32>
    %cst_11 = arith.constant 0.000000e+00 : f32
    %14 = vector.broadcast %cst_11 : f32 to vector<4x1xf32>
    %15 = arith.maximumf %13, %14 : vector<4x1xf32>
    %16 = arith.addf %12, %15 : vector<4x1xf32>
    %cst_12 = arith.constant dense<0.000000e+00> : vector<64x1xf32>
    %17 = tpu.matmul %9, %16, %cst_12 {dimension_numbers = #tpu.dot_dimension_numbers<[1], [0], [0], [1], [0, 0, 1, 1], [], []>} : vector<64x4xf32>, vector<4x1xf32>, vector<64x1xf32> -> vector<64x1xf32>
    %18 = arith.negf %17 : vector<64x1xf32>
    %19 = math.exp %18 : vector<64x1xf32>
    %cst_13 = arith.constant 1.000000e+00 : f32
    %20 = vector.broadcast %cst_13 : f32 to vector<64x1xf32>
    %21 = arith.addf %20, %19 : vector<64x1xf32>
    %22 = arith.divf %20, %21 : vector<64x1xf32>
    %23 = vector.broadcast %22 : vector<64x1xf32> to vector<64x256xf32>
    %24 = arith.mulf %1, %23 : vector<64x256xf32>
    %c0_14 = arith.constant 0 : index
    %c0_15 = arith.constant 0 : index
    %c0_16 = arith.constant 0 : index
    %25 = vector.load %arg4[%c0_14, %c0_15, %c0_16] : memref<1x64x256xf32, #tpu.memory_space<vmem>>, vector<1x64x256xf32>
    %26 = vector.shape_cast %25 : vector<1x64x256xf32> to vector<64x256xf32>
    %27 = vector.shape_cast %24 : vector<64x256xf32> to vector<1x64x256xf32>
    tpu.vector_store %arg4[%c0_14, %c0_15, %c0_16], %27 {strides = array<i32>} : memref<1x64x256xf32, #tpu.memory_space<vmem>>, vector<1x64x256xf32>,
    return
  }
  func.func @transform_0(%arg0: i32) -> (i32, i32, i32) {
    %c0_i32 = arith.constant 0 : i32
    %c0_i32_0 = arith.constant 0 : i32
    %c0_i32_1 = arith.constant 0 : i32
    return %arg0, %c0_i32, %c0_i32_0 : i32, i32, i32
  }
  func.func @transform_1(%arg0: i32) -> (i32, i32) {
    %c0_i32 = arith.constant 0 : i32
    %c0_i32_0 = arith.constant 0 : i32
    %c0_i32_1 = arith.constant 0 : i32
    return %c0_i32, %c0_i32_0 : i32, i32
  }
  func.func @transform_2(%arg0: i32) -> (i32, i32) {
    %c0_i32 = arith.constant 0 : i32
    %c0_i32_0 = arith.constant 0 : i32
    %c0_i32_1 = arith.constant 0 : i32
    return %c0_i32, %c0_i32_0 : i32, i32
  }
  func.func @transform_3(%arg0: i32) -> (i32, i32, i32) {
    %c0_i32 = arith.constant 0 : i32
    %c0_i32_0 = arith.constant 0 : i32
    %c0_i32_1 = arith.constant 0 : i32
    return %arg0, %c0_i32, %c0_i32_0 : i32, i32, i32
  }
}

</mosaic_0001>

<llo_original>
// kernel: tpu_custom_call.1
$region0: #{tpu_custom_call.1}
  #allocation0 [shape = 'u32[]', space=smem, size = 0x4, offset = 0x4, fixed_abs, tag = 'smem constant byte address 0x4 - core index']
  #allocation1 [shape = 'u32[144,128]{1,0:T(1,128)}', space=vmem, size = 0x12000, scoped, tag = 'internal scratch']
  %s0 = inlined_call_operand.hbm [shape: f32[2,64,256], index: 0, kind: input, shape index: {}]
  %s1 = inlined_call_operand.hbm [shape: f32[4,64], index: 1, kind: input, shape index: {}]
  %s2 = inlined_call_operand.hbm [shape: f32[64,4], index: 2, kind: input, shape index: {}]
  %s3 = inlined_call_operand.hbm [shape: f32[2,64,256], index: 3, kind: output, shape index: {}]
  %s4 = sld [smem:[#allocation0]]
  $region57: #{tpu_custom_call.1} parent=0
    _
  %s6 = ssub.s32 1, %s4
  %s7 = scalar_select 0, %s6, %s4
  $region1: #{tpu_custom_call.1} parent=0
    #allocation2 [shape = 'u8[131072]{0}', space=vmem, size = 0x20000, scoped, tag = 'input window, operand 0']
    #allocation3 [shape = 's32[2]{0}', space=sflag, size = 0x8, scoped, tag = 'scoped memory for tpu_custom_call.1']
    #allocation4 [shape = 's32[2]{0}', space=sflag, size = 0x8, scoped, tag = 'scoped memory for tpu_custom_call.1']
    #allocation5 [shape = 'u8[2048]{0}', space=vmem, size = 0x800, scoped, tag = 'input window, operand 1, single buffered']
    #allocation6 [shape = 's32[1]{0}', space=sflag, size = 0x4, scoped, tag = 'scoped memory for tpu_custom_call.1']
    #allocation7 [shape = 'u8[32768]{0}', space=vmem, size = 0x8000, scoped, tag = 'input window, operand 2, single buffered']
    #allocation8 [shape = 'u8[131072]{0}', space=vmem, size = 0x20000, scoped, tag = 'output window, operand 0']
    %8 = vsyncpa [#allocation3], 0
    %s9 = scalar_lea.sflag [#allocation3], 1
    %10 = vsyncpa %s9, 0
    %11 = vsyncpa [#allocation6], 0
    %12 = vsyncpa [#allocation4], 0
    %s13 = scalar_lea.sflag [#allocation4], 1
    %14 = vsyncpa %s13, 0
    loop: start=0, step=1, limit=4
    $region2: #{tpu_custom_call.1} parent=1 // loop_pre_header
      _
    $region3: #{tpu_custom_call.1} parent=1 // loop_header
      %s16 = sphi 0, %s20
      %p17 = scmp.ge.s32.totalorder %s16, 4
      %s26 = sphi 0, %s28
      %s29 = sphi 0, %s26
      %s30 = sphi 0, %s29
      %s46 = sphi 0, %s30
      %s50 = sphi 0, %s50
      %s52 = sphi 0, %s50
      %s53 = sphi 0, %s52
      %s67 = sphi 0, %s53
      %s71 = sphi 0, %s71
      %s73 = sphi 0, %s71
      %s74 = sphi 0, %s73
      %s88 = sphi 0, %s74
      %s94 = sphi 0, %s96
      %s97 = sphi 0, %s94
      %s98 = sphi 0, %s97
      %s114 = sphi 0, %s98
    $region4: #{tpu_custom_call.1} parent=1 // loop_header_branch
      %19 = sbr.rel (%p17) target = $region8
    $region5: #{tpu_custom_call.1} parent=1 // loop_body
      %s21 = ssub.s32 %s16, 1
      %s22 = ssub.s32 %s16, 2
      %s23 = sadd.s32 %s16, 1
      %s24 = ssub.s32 %s16, %s23
      %p25 = scmp.eq.s32.totalorder %s24, 0
      %s27 = sadd.s32 %s26, 1
      %s28 = scalar_select %p25, %s26, %s27
      %p31 = pneg %p25
      %p32 = scmp.eq.s32.totalorder %s16, 1
      %p33 = por %p31, %p32
      %p34 = scmp.ne.s32.totalorder %s26, %s29
      %p35 = scmp.eq.s32.totalorder %s16, 0
      %p36 = por %p34, %p35
      %p37 = scmp.ne.s32.totalorder %s26, %s29
      %p38 = scmp.eq.s32.totalorder %s21, 1
      %p39 = por %p37, %p38
      %p40 = scmp.ne.s32.totalorder %s29, %s30
      %p41 = scmp.eq.s32.totalorder %s21, 0
      %p42 = por %p40, %p41
      %p43 = scmp.ne.s32.totalorder %s29, %s30
      %p44 = scmp.eq.s32.totalorder %s22, 1
      %p45 = por %p43, %p44
      %p47 = scmp.ne.s32.totalorder %s30, %s46
      %p48 = scmp.eq.s32.totalorder %s22, 0
      %p49 = por %p47, %p48
      %s51 = sadd.s32 %s50, 1
      %p54 = scmp.eq.s32.totalorder %s16, 1
      %p55 = scmp.ne.s32.totalorder %s50, %s52
      %p56 = scmp.eq.s32.totalorder %s16, 0
      %p57 = por %p55, %p56
      %p58 = scmp.ne.s32.totalorder %s50, %s52
      %p59 = scmp.eq.s32.totalorder %s21, 1
      %p60 = por %p58, %p59
      %p61 = scmp.ne.s32.totalorder %s52, %s53
      %p62 = scmp.eq.s32.totalorder %s21, 0
      %p63 = por %p61, %p62
      %p64 = scmp.ne.s32.totalorder %s52, %s53
      %p65 = scmp.eq.s32.totalorder %s22, 1
      %p66 = por %p64, %p65
      %p68 = scmp.ne.s32.totalorder %s53, %s67
      %p69 = scmp.eq.s32.totalorder %s22, 0
      %p70 = por %p68, %p69
      %s72 = sadd.s32 %s71, 1
      %p75 = scmp.eq.s32.totalorder %s16, 1
      %p76 = scmp.ne.s32.totalorder %s71, %s73
      %p77 = scmp.eq.s32.totalorder %s16, 0
      %p78 = por %p76, %p77
      %p79 = scmp.ne.s32.totalorder %s71, %s73
      %p80 = scmp.eq.s32.totalorder %s21, 1
      %p81 = por %p79, %p80
      %p82 = scmp.ne.s32.totalorder %s73, %s74
      %p83 = scmp.eq.s32.totalorder %s21, 0
      %p84 = por %p82, %p83
      %p85 = scmp.ne.s32.totalorder %s73, %s74
      %p86 = scmp.eq.s32.totalorder %s22, 1
      %p87 = por %p85, %p86
      %p89 = scmp.ne.s32.totalorder %s74, %s88
      %p90 = scmp.eq.s32.totalorder %s22, 0
      %p91 = por %p89, %p90
      %s92 = ssub.s32 %s16, %s23
      %p93 = scmp.eq.s32.totalorder %s92, 0
      %s95 = sadd.s32 %s94, 1
      %s96 = scalar_select %p93, %s94, %s95
      %p99 = pneg %p93
      %p100 = scmp.eq.s32.totalorder %s16, 1
      %p101 = por %p99, %p100
      %p102 = scmp.ne.s32.totalorder %s94, %s97
      %p103 = scmp.eq.s32.totalorder %s16, 0
      %p104 = por %p102, %p103
      %p105 = scmp.ne.s32.totalorder %s94, %s97
      %p106 = scmp.eq.s32.totalorder %s21, 1
      %p107 = por %p105, %p106
      %p108 = scmp.ne.s32.totalorder %s97, %s98
      %p109 = scmp.eq.s32.totalorder %s21, 0
      %p110 = por %p108, %p109
      %p111 = scmp.ne.s32.totalorder %s97, %s98
      %p112 = scmp.eq.s32.totalorder %s22, 1
      %p113 = por %p111, %p112
      %p115 = scmp.ne.s32.totalorder %s98, %s114
      %p116 = scmp.eq.s32.totalorder %s22, 0
      %p117 = por %p115, %p116
      %p118 = scmp.le.s32.totalorder 1, %s16
      %p119 = scmp.lt.s32.totalorder %s16, 3
      %p120 = pnand %p118, %p119
      %p121 = pneg %p120
      // Predicated region
      $region9: #{tpu_custom_call.1} parent=5 // pred_check
        _
      $region10: #{tpu_custom_call.1} parent=5 // pred_check_branch
        %123 = sbr.rel (%p120) target = $region12
      $region11: #{tpu_custom_call.1} parent=5 // pred_region
        %s124 = ssub.s32 %s16, 1
        // Predicated region
        $region13: #{tpu_custom_call.1} parent=11 // pred_check
          %p125 = pneg %p63
        $region14: #{tpu_custom_call.1} parent=11 // pred_check_branch
          %127 = sbr.rel (%p125) target = $region16
        $region15: #{tpu_custom_call.1} parent=11 // pred_region
          %s129 = ssub.s32 64, 64
          %130 = vsyncadd [#allocation6], %s129
          %s132 = sshll.u32 [#allocation5], 4
          %s133 = int_to_ptr.vmem [resolvable:$true] %s132
          %135 = dma.hbm_to_vmem [thread:$0]  %s1, 64, %s133, [#allocation6]
        $region16: #{tpu_custom_call.1} parent=11 // pred_fallthru
          _
        // Predicated region
        $region17: #{tpu_custom_call.1} parent=11 // pred_check
          %p136 = pneg %p84
        $region18: #{tpu_custom_call.1} parent=11 // pred_check_branch
          %138 = sbr.rel (%p136) target = $region20
        $region19: #{tpu_custom_call.1} parent=11 // pred_region
          %s140 = ssub.s32 1024, 1024
          %141 = vsyncadd [#allocation6], %s140
          %s142 = sshll.u32 [#allocation7], 4
          %s143 = int_to_ptr.vmem [resolvable:$true] %s142
          %148 = dma.hbm_to_vmem [thread:$0]  %s2, 1024, %s143, [#allocation6], 128, 128, 8
        $region20: #{tpu_custom_call.1} parent=11 // pred_fallthru
          _
      $region12: #{tpu_custom_call.1} parent=5 // pred_fallthru
        _
      %p149 = scmp.lt.s32.totalorder %s16, 2
      // Predicated region
      $region21: #{tpu_custom_call.1} parent=5 // pred_check
        %p150 = pneg %p149
      $region22: #{tpu_custom_call.1} parent=5 // pred_check_branch
        %152 = sbr.rel (%p150) target = $region24
      $region23: #{tpu_custom_call.1} parent=5 // pred_region
        // Predicated region
        $region25: #{tpu_custom_call.1} parent=23 // pred_check
          %p153 = pneg %p36
        $region26: #{tpu_custom_call.1} parent=23 // pred_check_branch
          %155 = sbr.rel (%p153) target = $region28
        $region27: #{tpu_custom_call.1} parent=23 // pred_region
          %s156 = sand.u32 %s26, 1
          %s157 = scalar_lea.sflag [#allocation3], %s156
          %s158 = sand.u32 %s26, 1
          %s159 = smul.addr %s158, 128
          %s160 = scalar_lea.vmem [#allocation2], %s159
          %s162 = ssub.s32 2048, 2048
          %163 = vsyncadd %s157, %s162
          %s164 = smul.addr %s16, 16
          %s165 = smul.addr %s164, 128
          %s166 = scalar_lea.hbm %s0, %s165
          %s167 = sshll.u32 %s160, 4
          %s168 = int_to_ptr.vmem [resolvable:$true] %s167
          %173 = dma.hbm_to_vmem [thread:$0]  %s166, 2048, %s168, %s157, 256, 256, 16
        $region28: #{tpu_custom_call.1} parent=23 // pred_fallthru
          _
      $region24: #{tpu_custom_call.1} parent=5 // pred_fallthru
        _
      %p174 = scmp.le.s32.totalorder 1, %s16
      %p175 = scmp.lt.s32.totalorder %s16, 3
      %p176 = pnand %p174, %p175
      %p177 = pneg %p176
      // Predicated region
      $region29: #{tpu_custom_call.1} parent=5 // pred_check
        _
      $region30: #{tpu_custom_call.1} parent=5 // pred_check_branch
        %179 = sbr.rel (%p176) target = $region32
      $region31: #{tpu_custom_call.1} parent=5 // pred_region
        %s180 = ssub.s32 %s16, 1
        %s181 = sand.u32 %s29, 1
        %s182 = scalar_lea.sflag [#allocation3], %s181
        %s183 = sand.u32 %s29, 1
        %s184 = smul.addr %s183, 128
        %s185 = scalar_lea.vmem [#allocation2], %s184
        // Predicated region
        $region33: #{tpu_custom_call.1} parent=31 // pred_check
          %p186 = pneg %p42
        $region34: #{tpu_custom_call.1} parent=31 // pred_check_branch
          %188 = sbr.rel (%p186) target = $region36
        $region35: #{tpu_custom_call.1} parent=31 // pred_region
          %189 = dma.done %s182, 2048
        $region36: #{tpu_custom_call.1} parent=31 // pred_fallthru
          _
        // Predicated region
        $region37: #{tpu_custom_call.1} parent=31 // pred_check
          %p190 = pneg %p63
        $region38: #{tpu_custom_call.1} parent=31 // pred_check_branch
          %192 = sbr.rel (%p190) target = $region40
        $region39: #{tpu_custom_call.1} parent=31 // pred_region
          %193 = dma.done [#allocation6], 64
        $region40: #{tpu_custom_call.1} parent=31 // pred_fallthru
          _
        // Predicated region
        $region41: #{tpu_custom_call.1} parent=31 // pred_check
          %p194 = pneg %p84
        $region42: #{tpu_custom_call.1} parent=31 // pred_check_branch
          %196 = sbr.rel (%p194) target = $region44
        $region43: #{tpu_custom_call.1} parent=31 // pred_region
          %197 = dma.done [#allocation6], 1024
        $region44: #{tpu_custom_call.1} parent=31 // pred_fallthru
          _
        %s198 = sand.u32 %s29, 1
        %s199 = scalar_lea.sflag [#allocation3], %s198
        %s200 = sand.u32 %s29, 1
        %s201 = smul.addr %s200, 128
        %s202 = scalar_lea.vmem [#allocation2], %s201
        %p203 = pneg %p42
        %p204 = pneg %p39
        %p205 = pneg %p63
        %p206 = pneg %p60
        %p207 = pneg %p84
        %p208 = pneg %p81
        %p209 = pneg %p110
        %p210 = pneg %p107
        %s211 = sand.u32 %s97, 1
        %s212 = scalar_lea.sflag [#allocation4], %s211
        %s213 = sand.u32 %s97, 1
        %s214 = smul.addr %s213, 128
        %s215 = scalar_lea.vmem [#allocation8], %s214
        %v216 = vld [vmem:[%s185] sm:$0xff]
        %v217 = vld [vmem:[%s185 + $0x8] sm:$0xff]
        %v218 = vld [vmem:[%s185 + $0x10] sm:$0xff]
        %v219 = vld [vmem:[%s185 + $0x18] sm:$0xff]
        %v220 = vld [vmem:[%s185 + $0x20] sm:$0xff]
        %v221 = vld [vmem:[%s185 + $0x28] sm:$0xff]
        %v222 = vld [vmem:[%s185 + $0x30] sm:$0xff]
        %v223 = vld [vmem:[%s185 + $0x38] sm:$0xff]
        %v224 = vld [vmem:[%s185 + $0x40] sm:$0xff]
        %v225 = vld [vmem:[%s185 + $0x48] sm:$0xff]
        %v226 = vld [vmem:[%s185 + $0x50] sm:$0xff]
        %v227 = vld [vmem:[%s185 + $0x58] sm:$0xff]
        %v228 = vld [vmem:[%s185 + $0x60] sm:$0xff]
        %v229 = vld [vmem:[%s185 + $0x68] sm:$0xff]
        %v230 = vld [vmem:[%s185 + $0x70] sm:$0xff]
        %v231 = vld [vmem:[%s185 + $0x78] sm:$0xff]
        %v232 = vadd.f32 %v216, %v217
        %233 = vadd.xlane.f32.xlu0 %v232
        %v234 = vpop.xlane.xlu0 %233
        %v235 = vadd.f32 %v218, %v219
        %236 = vadd.xlane.f32.xlu0 %v235
        %v237 = vpop.xlane.xlu0 %236
        %v238 = vadd.f32 %v220, %v221
        %239 = vadd.xlane.f32.xlu0 %v238
        %v240 = vpop.xlane.xlu0 %239
        %v241 = vadd.f32 %v222, %v223
        %242 = vadd.xlane.f32.xlu0 %v241
        %v243 = vpop.xlane.xlu0 %242
        %v244 = vadd.f32 %v224, %v225
        %245 = vadd.xlane.f32.xlu0 %v244
        %v246 = vpop.xlane.xlu0 %245
        %v247 = vadd.f32 %v226, %v227
        %248 = vadd.xlane.f32.xlu0 %v247
        %v249 = vpop.xlane.xlu0 %248
        %v250 = vadd.f32 %v228, %v229
        %251 = vadd.xlane.f32.xlu0 %v250
        %v252 = vpop.xlane.xlu0 %251
        %v253 = vadd.f32 %v230, %v231
        %254 = vadd.xlane.f32.xlu0 %v253
        %v255 = vpop.xlane.xlu0 %254
        %v256 = vmul.f32 %v234, 0.00390625
        %v257 = vmul.f32 %v237, 0.00390625
        %v258 = vmul.f32 %v240, 0.00390625
        %v259 = vmul.f32 %v243, 0.00390625
        %v260 = vmul.f32 %v246, 0.00390625
        %v261 = vmul.f32 %v249, 0.00390625
        %v262 = vmul.f32 %v252, 0.00390625
        %v263 = vmul.f32 %v255, 0.00390625
        %v264 = vmax.f32 %v216, %v217
        %265 = vmax.xlane.f32.xlu0 %v264
        %v266 = vpop.xlane.xlu0 %265
        %v267 = vmax.f32 %v218, %v219
        %268 = vmax.xlane.f32.xlu0 %v267
        %v269 = vpop.xlane.xlu0 %268
        %v270 = vmax.f32 %v220, %v221
        %271 = vmax.xlane.f32.xlu0 %v270
        %v272 = vpop.xlane.xlu0 %271
        %v273 = vmax.f32 %v222, %v223
        %274 = vmax.xlane.f32.xlu0 %v273
        %v275 = vpop.xlane.xlu0 %274
        %v276 = vmax.f32 %v224, %v225
        %277 = vmax.xlane.f32.xlu0 %v276
        %v278 = vpop.xlane.xlu0 %277
        %v279 = vmax.f32 %v226, %v227
        %280 = vmax.xlane.f32.xlu0 %v279
        %v281 = vpop.xlane.xlu0 %280
        %v282 = vmax.f32 %v228, %v229
        %283 = vmax.xlane.f32.xlu0 %v282
        %v284 = vpop.xlane.xlu0 %283
        %v285 = vmax.f32 %v230, %v231
        %286 = vmax.xlane.f32.xlu0 %v285
        %v287 = vpop.xlane.xlu0 %286
        %v288 = vld [vmem:[#allocation5] sm:$0xf]
        %v289 = vld [vmem:[#allocation7] sm:$0xff]
        %v290 = vld [vmem:[#allocation7 + $0x8] sm:$0xff]
        %v291 = vld [vmem:[#allocation7 + $0x10] sm:$0xff]
        %v292 = vld [vmem:[#allocation7 + $0x18] sm:$0xff]
        %v293 = vld [vmem:[#allocation7 + $0x20] sm:$0xff]
        %v294 = vld [vmem:[#allocation7 + $0x28] sm:$0xff]
        %v295 = vld [vmem:[#allocation7 + $0x30] sm:$0xff]
        %v296 = vld [vmem:[#allocation7 + $0x38] sm:$0xff]
        %vm297 = vcmask 523264
        %v299 = vsel %vm297, %v288, 0
        %301 = vmatprep.subr.mxu0 0.0
        %302 = vmatpush1.msra.mxu0 %v256
        %303 = vmatprep.subr.mxu0 0.0
        %304 = vmatpush1.msra.mxu0 %v257
        %305 = vmatprep.subr.mxu0 0.0
        %306 = vmatpush1.msra.mxu0 %v258
        %307 = vmatprep.subr.mxu0 0.0
        %308 = vmatpush1.msra.mxu0 %v259
        %309 = vmatprep.subr.mxu0 0.0
        %310 = vmatpush1.msra.mxu0 %v260
        %311 = vmatprep.subr.mxu0 0.0
        %312 = vmatpush1.msra.mxu0 %v261
        %313 = vmatprep.subr.mxu0 0.0
        %314 = vmatpush1.msra.mxu0 %v262
        %315 = vmatprep.subr.mxu0 0.0
        %316 = vmatpush1.msra.mxu0 %v263
        %317 = vmatprep.subr.mxu0 0.0
        %318 = vmatpush1.msra.mxu0 0.0
        %319 = vmatprep.subr.mxu0 0.0
        %320 = vmatpush1.msra.mxu0 0.0
        %321 = vmatprep.subr.mxu0 0.0
        %322 = vmatpush1.msra.mxu0 0.0
        %323 = vmatprep.subr.mxu0 0.0
        %324 = vmatpush1.msra.mxu0 0.0
        %325 = vmatprep.subr.mxu0 0.0
        %326 = vmatpush1.msra.mxu0 0.0
        %327 = vmatprep.subr.mxu0 0.0
        %328 = vmatpush1.msra.mxu0 0.0
        %329 = vmatprep.subr.mxu0 0.0
        %330 = vmatpush1.msra.mxu0 0.0
        %331 = vmatprep.subr.mxu0 0.0
        %332 = vmatpush1.msra.mxu0 0.0
        %333 = vmatprep.subr.mxu0 0.0
        %334 = vmatpush1.msra.mxu0 0.0
        %335 = vmatprep.subr.mxu0 0.0
        %336 = vmatpush1.msra.mxu0 0.0
        %337 = vmatprep.subr.mxu0 0.0
        %338 = vmatpush1.msra.mxu0 0.0
        %339 = vmatprep.subr.mxu0 0.0
        %340 = vmatpush1.msra.mxu0 0.0
        %341 = vmatprep.subr.mxu0 0.0
        %342 = vmatpush1.msra.mxu0 0.0
        %343 = vmatprep.subr.mxu0 0.0
        %344 = vmatpush1.msra.mxu0 0.0
        %345 = vmatprep.subr.mxu0 0.0
        %346 = vmatpush1.msra.mxu0 0.0
        %347 = vmatprep.subr.mxu0 0.0
        %348 = vmatpush1.msra.mxu0 0.0
        %349 = vmatprep.subr.mxu0 0.0
        %350 = vmatpush1.msra.mxu0 0.0
        %351 = vmatprep.subr.mxu0 0.0
        %352 = vmatpush1.msra.mxu0 0.0
        %353 = vmatprep.subr.mxu0 0.0
        %354 = vmatpush1.msra.mxu0 0.0
        %355 = vmatprep.subr.mxu0 0.0
        %356 = vmatpush1.msra.mxu0 0.0
        %357 = vmatprep.subr.mxu0 0.0
        %358 = vmatpush1.msra.mxu0 0.0
        %359 = vmatprep.subr.mxu0 0.0
        %360 = vmatpush1.msra.mxu0 0.0
        %361 = vmatprep.subr.mxu0 0.0
        %362 = vmatpush1.msra.mxu0 0.0
        %363 = vmatprep.subr.mxu0 0.0
        %364 = vmatpush1.msra.mxu0 0.0
        %365 = vmatprep.mubr.f32.mxu0 0.0
        %366 = vmatmul.mubr.f32.gmra.mrb[0].mxu0 %v299
        %v367 = vpop.f32.mrb[0].mxu0
        %v368 = vadd.f32 0.0, %v367
        %v369 = vpop.f32.mrb[0].mxu0
        %370 = vdwg.mxu0
        %v371 = vmax.f32 %v368, 0.0
        %372 = vmatprep.subr.mxu0 0.0
        %373 = vmatpush1.msra.mxu0 %v266
        %374 = vmatprep.subr.mxu0 0.0
        %375 = vmatpush1.msra.mxu0 %v269
        %376 = vmatprep.subr.mxu0 0.0
        %377 = vmatpush1.msra.mxu0 %v272
        %378 = vmatprep.subr.mxu0 0.0
        %379 = vmatpush1.msra.mxu0 %v275
        %380 = vmatprep.subr.mxu0 0.0
        %381 = vmatpush1.msra.mxu0 %v278
        %382 = vmatprep.subr.mxu0 0.0
        %383 = vmatpush1.msra.mxu0 %v281
        %384 = vmatprep.subr.mxu0 0.0
        %385 = vmatpush1.msra.mxu0 %v284
        %386 = vmatprep.subr.mxu0 0.0
        %387 = vmatpush1.msra.mxu0 %v287
        %388 = vmatprep.subr.mxu0 0.0
        %389 = vmatpush1.msra.mxu0 0.0
        %390 = vmatprep.subr.mxu0 0.0
        %391 = vmatpush1.msra.mxu0 0.0
        %392 = vmatprep.subr.mxu0 0.0
        %393 = vmatpush1.msra.mxu0 0.0
        %394 = vmatprep.subr.mxu0 0.0
        %395 = vmatpush1.msra.mxu0 0.0
        %396 = vmatprep.subr.mxu0 0.0
        %397 = vmatpush1.msra.mxu0 0.0
        %398 = vmatprep.subr.mxu0 0.0
        %399 = vmatpush1.msra.mxu0 0.0
        %400 = vmatprep.subr.mxu0 0.0
        %401 = vmatpush1.msra.mxu0 0.0
        %402 = vmatprep.subr.mxu0 0.0
        %403 = vmatpush1.msra.mxu0 0.0
        %404 = vmatprep.subr.mxu0 0.0
        %405 = vmatpush1.msra.mxu0 0.0
        %406 = vmatprep.subr.mxu0 0.0
        %407 = vmatpush1.msra.mxu0 0.0
        %408 = vmatprep.subr.mxu0 0.0
        %409 = vmatpush1.msra.mxu0 0.0
        %410 = vmatprep.subr.mxu0 0.0
        %411 = vmatpush1.msra.mxu0 0.0
        %412 = vmatprep.subr.mxu0 0.0
        %413 = vmatpush1.msra.mxu0 0.0
        %414 = vmatprep.subr.mxu0 0.0
        %415 = vmatpush1.msra.mxu0 0.0
        %416 = vmatprep.subr.mxu0 0.0
        %417 = vmatpush1.msra.mxu0 0.0
        %418 = vmatprep.subr.mxu0 0.0
        %419 = vmatpush1.msra.mxu0 0.0
        %420 = vmatprep.subr.mxu0 0.0
        %421 = vmatpush1.msra.mxu0 0.0
        %422 = vmatprep.subr.mxu0 0.0
        %423 = vmatpush1.msra.mxu0 0.0
        %424 = vmatprep.subr.mxu0 0.0
        %425 = vmatpush1.msra.mxu0 0.0
        %426 = vmatprep.subr.mxu0 0.0
        %427 = vmatpush1.msra.mxu0 0.0
        %428 = vmatprep.subr.mxu0 0.0
        %429 = vmatpush1.msra.mxu0 0.0
        %430 = vmatprep.subr.mxu0 0.0
        %431 = vmatpush1.msra.mxu0 0.0
        %432 = vmatprep.subr.mxu0 0.0
        %433 = vmatpush1.msra.mxu0 0.0
        %434 = vmatprep.subr.mxu0 0.0
        %435 = vmatpush1.msra.mxu0 0.0
        %436 = vmatprep.mubr.f32.mxu0 0.0
        %437 = vmatmul.mubr.f32.gmra.mrb[0].mxu0 %v299
        %v438 = vpop.f32.mrb[0].mxu0
        %v439 = vadd.f32 0.0, %v438
        %v440 = vpop.f32.mrb[0].mxu0
        %441 = vdwg.mxu0
        %v442 = vmax.f32 %v439, 0.0
        %v443 = vadd.f32 %v371, %v442
        %vm444 = vcmask 31744
        %v446 = vsel %vm444, %v289, 0
        %v449 = vsel %vm444, %v290, 0
        %v452 = vsel %vm444, %v291, 0
        %v455 = vsel %vm444, %v292, 0
        %v458 = vsel %vm444, %v293, 0
        %v461 = vsel %vm444, %v294, 0
        %v464 = vsel %vm444, %v295, 0
        %v467 = vsel %vm444, %v296, 0
        %vm469 = vcmask 1043456
        %v471 = vsel %vm469, %v443, 0
        %473 = vmatprep.subr.mxu0 0.0
        %474 = vmatpush1.msra.mxu0 %v471
        %475 = vmatprep.subr.mxu0 0.0
        %476 = vmatpush1.msra.mxu0 0.0
        %477 = vmatprep.subr.mxu0 0.0
        %478 = vmatpush1.msra.mxu0 0.0
        %479 = vmatprep.subr.mxu0 0.0
        %480 = vmatpush1.msra.mxu0 0.0
        %481 = vmatprep.subr.mxu0 0.0
        %482 = vmatpush1.msra.mxu0 0.0
        %483 = vmatprep.subr.mxu0 0.0
        %484 = vmatpush1.msra.mxu0 0.0
        %485 = vmatprep.subr.mxu0 0.0
        %486 = vmatpush1.msra.mxu0 0.0
        %487 = vmatprep.subr.mxu0 0.0
        %488 = vmatpush1.msra.mxu0 0.0
        %489 = vmatprep.subr.mxu0 0.0
        %490 = vmatpush1.msra.mxu0 0.0
        %491 = vmatprep.subr.mxu0 0.0
        %492 = vmatpush1.msra.mxu0 0.0
        %493 = vmatprep.subr.mxu0 0.0
        %494 = vmatpush1.msra.mxu0 0.0
        %495 = vmatprep.subr.mxu0 0.0
        %496 = vmatpush1.msra.mxu0 0.0
        %497 = vmatprep.subr.mxu0 0.0
        %498 = vmatpush1.msra.mxu0 0.0
        %499 = vmatprep.subr.mxu0 0.0
        %500 = vmatpush1.msra.mxu0 0.0
        %501 = vmatprep.subr.mxu0 0.0
        %502 = vmatpush1.msra.mxu0 0.0
        %503 = vmatprep.subr.mxu0 0.0
        %504 = vmatpush1.msra.mxu0 0.0
        %505 = vmatprep.subr.mxu0 0.0
        %506 = vmatpush1.msra.mxu0 0.0
        %507 = vmatprep.subr.mxu0 0.0
        %508 = vmatpush1.msra.mxu0 0.0
        %509 = vmatprep.subr.mxu0 0.0
        %510 = vmatpush1.msra.mxu0 0.0
        %511 = vmatprep.subr.mxu0 0.0
        %512 = vmatpush1.msra.mxu0 0.0
        %513 = vmatprep.subr.mxu0 0.0
        %514 = vmatpush1.msra.mxu0 0.0
        %515 = vmatprep.subr.mxu0 0.0
        %516 = vmatpush1.msra.mxu0 0.0
        %517 = vmatprep.subr.mxu0 0.0
        %518 = vmatpush1.msra.mxu0 0.0
        %519 = vmatprep.subr.mxu0 0.0
        %520 = vmatpush1.msra.mxu0 0.0
        %521 = vmatprep.subr.mxu0 0.0
        %522 = vmatpush1.msra.mxu0 0.0
        %523 = vmatprep.subr.mxu0 0.0
        %524 = vmatpush1.msra.mxu0 0.0
        %525 = vmatprep.subr.mxu0 0.0
        %526 = vmatpush1.msra.mxu0 0.0
        %527 = vmatprep.subr.mxu0 0.0
        %528 = vmatpush1.msra.mxu0 0.0
        %529 = vmatprep.subr.mxu0 0.0
        %530 = vmatpush1.msra.mxu0 0.0
        %531 = vmatprep.subr.mxu0 0.0
        %532 = vmatpush1.msra.mxu0 0.0
        %533 = vmatprep.subr.mxu0 0.0
        %534 = vmatpush1.msra.mxu0 0.0
        %535 = vmatprep.subr.mxu0 0.0
        %536 = vmatpush1.msra.mxu0 0.0
        %537 = vmatprep.mubr.f32.mxu0 0.0
        %538 = vmatmul.mubr.f32.gmra.mrb[0].mxu0 %v446
        %v539 = vpop.f32.mrb[0].mxu0
        %v540 = vadd.f32 0.0, %v539
        %v541 = vpop.f32.mrb[0].mxu0
        %542 = vmatprep.mubr.f32.mxu0 0.0
        %543 = vmatmul.mubr.f32.gmra.mrb[0].mxu0 %v449
        %v544 = vpop.f32.mrb[0].mxu0
        %v545 = vadd.f32 0.0, %v544
        %v546 = vpop.f32.mrb[0].mxu0
        %547 = vmatprep.mubr.f32.mxu0 0.0
        %548 = vmatmul.mubr.f32.gmra.mrb[0].mxu0 %v452
        %v549 = vpop.f32.mrb[0].mxu0
        %v550 = vadd.f32 0.0, %v549
        %v551 = vpop.f32.mrb[0].mxu0
        %552 = vmatprep.mubr.f32.mxu0 0.0
        %553 = vmatmul.mubr.f32.gmra.mrb[0].mxu0 %v455
        %v554 = vpop.f32.mrb[0].mxu0
        %v555 = vadd.f32 0.0, %v554
        %v556 = vpop.f32.mrb[0].mxu0
        %557 = vmatprep.mubr.f32.mxu0 0.0
        %558 = vmatmul.mubr.f32.gmra.mrb[0].mxu0 %v458
        %v559 = vpop.f32.mrb[0].mxu0
        %v560 = vadd.f32 0.0, %v559
        %v561 = vpop.f32.mrb[0].mxu0
        %562 = vmatprep.mubr.f32.mxu0 0.0
        %563 = vmatmul.mubr.f32.gmra.mrb[0].mxu0 %v461
        %v564 = vpop.f32.mrb[0].mxu0
        %v565 = vadd.f32 0.0, %v564
        %v566 = vpop.f32.mrb[0].mxu0
        %567 = vmatprep.mubr.f32.mxu0 0.0
        %568 = vmatmul.mubr.f32.gmra.mrb[0].mxu0 %v464
        %v569 = vpop.f32.mrb[0].mxu0
        %v570 = vadd.f32 0.0, %v569
        %v571 = vpop.f32.mrb[0].mxu0
        %572 = vmatprep.mubr.f32.mxu0 0.0
        %573 = vmatmul.mubr.f32.gmra.mrb[0].mxu0 %v467
        %v574 = vpop.f32.mrb[0].mxu0
        %v575 = vadd.f32 0.0, %v574
        %v576 = vpop.f32.mrb[0].mxu0
        %577 = vdwg.mxu0
        %v578 = vxor.u32 %v540, 2147483648
        %v579 = vxor.u32 %v545, 2147483648
        %v580 = vxor.u32 %v550, 2147483648
        %v581 = vxor.u32 %v555, 2147483648
        %v582 = vxor.u32 %v560, 2147483648
        %v583 = vxor.u32 %v565, 2147483648
        %v584 = vxor.u32 %v570, 2147483648
        %v585 = vxor.u32 %v575, 2147483648
        %v586 = vmul.f32 %v578, 1.442695
        %v587 = vpow.pop %v586
        %v588 = vmul.f32 %v579, 1.442695
        %v589 = vpow.pop %v588
        %v590 = vmul.f32 %v580, 1.442695
        %v591 = vpow.pop %v590
        %v592 = vmul.f32 %v581, 1.442695
        %v593 = vpow.pop %v592
        %v594 = vmul.f32 %v582, 1.442695
        %v595 = vpow.pop %v594
        %v596 = vmul.f32 %v583, 1.442695
        %v597 = vpow.pop %v596
        %v598 = vmul.f32 %v584, 1.442695
        %v599 = vpow.pop %v598
        %v600 = vmul.f32 %v585, 1.442695
        %v601 = vpow.pop %v600
        %v602 = vadd.f32 %v587, 1.0
        %v603 = vadd.f32 %v589, 1.0
        %v604 = vadd.f32 %v591, 1.0
        %v605 = vadd.f32 %v593, 1.0
        %v606 = vadd.f32 %v595, 1.0
        %v607 = vadd.f32 %v597, 1.0
        %v608 = vadd.f32 %v599, 1.0
        %v609 = vadd.f32 %v601, 1.0
        %v610 = vrcp.pop %v602
        %v611 = vmul.f32 1.0, %v610
        %v612 = vrcp.pop %v603
        %v613 = vmul.f32 1.0, %v612
        %v614 = vrcp.pop %v604
        %v615 = vmul.f32 1.0, %v614
        %v616 = vrcp.pop %v605
        %v617 = vmul.f32 1.0, %v616
        %v618 = vrcp.pop %v606
        %v619 = vmul.f32 1.0, %v618
        %v620 = vrcp.pop %v607
        %v621 = vmul.f32 1.0, %v620
        %v622 = vrcp.pop %v608
        %v623 = vmul.f32 1.0, %v622
        %v624 = vrcp.pop %v609
        %v625 = vmul.f32 1.0, %v624
        %627 = vset.pattern.permute.xlu0 0
        %628 = vperm.xlu0 %627, %v611
        %v629 = vpop.permute.xlu0 %628
        %632 = vset.pattern.permute.xlu0 0
        %633 = vperm.xlu0 %632, %v613
        %v634 = vpop.permute.xlu0 %633
        %637 = vset.pattern.permute.xlu0 0
        %638 = vperm.xlu0 %637, %v615
        %v639 = vpop.permute.xlu0 %638
        %642 = vset.pattern.permute.xlu0 0
        %643 = vperm.xlu0 %642, %v617
        %v644 = vpop.permute.xlu0 %643
        %647 = vset.pattern.permute.xlu0 0
        %648 = vperm.xlu0 %647, %v619
        %v649 = vpop.permute.xlu0 %648
        %652 = vset.pattern.permute.xlu0 0
        %653 = vperm.xlu0 %652, %v621
        %v654 = vpop.permute.xlu0 %653
        %657 = vset.pattern.permute.xlu0 0
        %658 = vperm.xlu0 %657, %v623
        %v659 = vpop.permute.xlu0 %658
        %662 = vset.pattern.permute.xlu0 0
        %663 = vperm.xlu0 %662, %v625
        %v664 = vpop.permute.xlu0 %663
        %v666 = vmul.f32 %v216, %v629
        %v667 = vmul.f32 %v217, %v629
        %v668 = vmul.f32 %v218, %v634
        %v669 = vmul.f32 %v219, %v634
        %v670 = vmul.f32 %v220, %v639
        %v671 = vmul.f32 %v221, %v639
        %v672 = vmul.f32 %v222, %v644
        %v673 = vmul.f32 %v223, %v644
        %v674 = vmul.f32 %v224, %v649
        %v675 = vmul.f32 %v225, %v649
        %v676 = vmul.f32 %v226, %v654
        %v677 = vmul.f32 %v227, %v654
        %v678 = vmul.f32 %v228, %v659
        %v679 = vmul.f32 %v229, %v659
        %v680 = vmul.f32 %v230, %v664
        %v681 = vmul.f32 %v231, %v664
        %682 = vst [vmem:[%s215] sm:$0xff] %v666
        %683 = vst [vmem:[%s215 + $0x8] sm:$0xff] %v667
        %684 = vst [vmem:[%s215 + $0x10] sm:$0xff] %v668
        %685 = vst [vmem:[%s215 + $0x18] sm:$0xff] %v669
        %686 = vst [vmem:[%s215 + $0x20] sm:$0xff] %v670
        %687 = vst [vmem:[%s215 + $0x28] sm:$0xff] %v671
        %688 = vst [vmem:[%s215 + $0x30] sm:$0xff] %v672
        %689 = vst [vmem:[%s215 + $0x38] sm:$0xff] %v673
        %690 = vst [vmem:[%s215 + $0x40] sm:$0xff] %v674
        %691 = vst [vmem:[%s215 + $0x48] sm:$0xff] %v675
        %692 = vst [vmem:[%s215 + $0x50] sm:$0xff] %v676
        %693 = vst [vmem:[%s215 + $0x58] sm:$0xff] %v677
        %694 = vst [vmem:[%s215 + $0x60] sm:$0xff] %v678
        %695 = vst [vmem:[%s215 + $0x68] sm:$0xff] %v679
        %696 = vst [vmem:[%s215 + $0x70] sm:$0xff] %v680
        %697 = vst [vmem:[%s215 + $0x78] sm:$0xff] %v681
        %s698 = sand.u32 %s97, 1
        %s699 = scalar_lea.sflag [#allocation4], %s698
        %s700 = sand.u32 %s97, 1
        %s701 = smul.addr %s700, 128
        %s702 = scalar_lea.vmem [#allocation8], %s701
        // Predicated region
        $region45: #{tpu_custom_call.1} parent=31 // pred_check
          %p703 = pneg %p107
        $region46: #{tpu_custom_call.1} parent=31 // pred_check_branch
          %705 = sbr.rel (%p703) target = $region48
        $region47: #{tpu_custom_call.1} parent=31 // pred_region
          %s707 = ssub.s32 2048, 2048
          %708 = vsyncadd %s699, %s707
          %s709 = smul.addr %s21, 16
          %s710 = smul.addr %s709, 128
          %s711 = scalar_lea.hbm %s3, %s710
          %s712 = sshll.u32 %s702, 4
          %s713 = int_to_ptr.vmem [resolvable:$true] %s712
          %718 = dma.vmem_to_hbm [thread:$0]  %s713, 2048, %s711, %s699, 256, 256, 16
        $region48: #{tpu_custom_call.1} parent=31 // pred_fallthru
          _
      $region32: #{tpu_custom_call.1} parent=5 // pred_fallthru
        _
      %p719 = scmp.le.s32.totalorder 2, %s16
      // Predicated region
      $region49: #{tpu_custom_call.1} parent=5 // pred_check
        %p720 = pneg %p719
      $region50: #{tpu_custom_call.1} parent=5 // pred_check_branch
        %722 = sbr.rel (%p720) target = $region52
      $region51: #{tpu_custom_call.1} parent=5 // pred_region
        %s723 = ssub.s32 %s16, 2
        // Predicated region
        $region53: #{tpu_custom_call.1} parent=51 // pred_check
          %p724 = pneg %p113
        $region54: #{tpu_custom_call.1} parent=51 // pred_check_branch
          %726 = sbr.rel (%p724) target = $region56
        $region55: #{tpu_custom_call.1} parent=51 // pred_region
          %s727 = sand.u32 %s98, 1
          %s728 = scalar_lea.sflag [#allocation4], %s727
          %s729 = sand.u32 %s98, 1
          %s730 = smul.addr %s729, 128
          %s731 = scalar_lea.vmem [#allocation8], %s730
          %732 = dma.done %s728, 2048
        $region56: #{tpu_custom_call.1} parent=51 // pred_fallthru
          _
      $region52: #{tpu_custom_call.1} parent=5 // pred_fallthru
        _
    $region6: #{tpu_custom_call.1} parent=1 // loop_footer
      %s20 = sadd.s32 1, %s16
    $region7: #{tpu_custom_call.1} parent=1 // loop_footer_branch
      %15 = sbr.rel target = $region3
    $region8: #{tpu_custom_call.1} parent=1 // loop_exit
      _
    %733 = vsyncpa [#allocation3], 1
    %s734 = scalar_lea.sflag [#allocation3], 1
    %735 = vsyncpa %s734, 1
    %736 = vsyncpa [#allocation6], 1
    %737 = vsyncpa [#allocation4], 1
    %s738 = scalar_lea.sflag [#allocation4], 1
    %739 = vsyncpa %s738, 1

</llo_original>
